<compile_context>
chip_gen: v6e
topology: v6e:2x2x1
jax: 0.10.0
libtpu: 0.0.40
codegen_flags: <defaults>
</compile_context>

<pallas_src>
import math

import jax
import jax.numpy as jnp
from jax.experimental import pallas as pl
from jax.experimental.pallas import tpu as pltpu

_NEG_INF = -1e30  # finite mask value: no NaNs even for fully-masked rows


# --------------------------------------------------------------------------
# Kernel
# --------------------------------------------------------------------------
def _mca_kernel(x_ref, mask_ref, wqkv_ref, bqkv_ref, wout_ref, bout_ref, o_ref):
    """One grid step processes a (Bb, T, C) slab of the batch.

    Host-prepared layouts:
      x_ref    : (Bb, T, C)         activations
      mask_ref : (R, R)   f32       additive causal (+ batch-block-diag) mask
      wqkv_ref : (3H, C, D) bf16    group/head-major fused QKV weights
                                    (q part pre-scaled by 1/sqrt(D))
      bqkv_ref : (3H, 1, D) f32     fused QKV bias (q part pre-scaled)
      wout_ref : (H, D, C)  bf16    output projection, head-major
      bout_ref : (1, C)     f32
      o_ref    : (Bb, T, C)
    """
    Bb, T, C = x_ref.shape
    G, _, D = wqkv_ref.shape          # G = 3 * H
    H = G // 3
    R = Bb * T

    # ---- fused QKV projection (bf16 MXU operands, f32 accumulation) -------
    x2 = x_ref[...].reshape(R, C).astype(jnp.bfloat16)           # (R, C)
    xg = jnp.broadcast_to(x2[None, :, :], (G, R, C))             # (3H, R, C)
    qkv = jnp.einsum("grc,gcd->grd", xg, wqkv_ref[...],
                     preferred_element_type=jnp.float32)         # (3H, R, D)
    qkv = qkv + bqkv_ref[...]                                    # f32

    # major-axis (cheap) static slices: q already scaled by 1/sqrt(D)
    q = qkv[0:H].astype(jnp.bfloat16)                            # (H, R, D)
    k = qkv[H:2 * H].astype(jnp.bfloat16)
    v = qkv[2 * H:].astype(jnp.bfloat16)

    # ---- head-batched attention -------------------------------------------
    scores = jnp.einsum("hrd,hsd->hrs", q, k,
                        preferred_element_type=jnp.float32)      # (H, R, R)
    scores = scores + mask_ref[...]                              # additive mask

    # softmax in f32 (VPU/EUP work stays f32)
    m = jnp.max(scores, axis=-1, keepdims=True)
    e = jnp.exp(scores - m)
    p = e * pl.reciprocal(jnp.sum(e, axis=-1, keepdims=True), approx=True)

    pv = jnp.einsum("hrs,hsd->hrd", p.astype(jnp.bfloat16), v,
                    preferred_element_type=jnp.float32)          # (H, R, D)

    # ---- output projection (head concat fused as a sum over heads) ---------
    proj = jnp.einsum("hrd,hdc->hrc", pv.astype(jnp.bfloat16), wout_ref[...],
                      preferred_element_type=jnp.float32)        # (H, R, C)
    out = proj[0]
    for h in range(1, H):             # static, major-axis indexing only
        out = out + proj[h]
    out = out + bout_ref[...]                                    # (1, C) bias

    o_ref[...] = out.reshape(Bb, T, C).astype(o_ref.dtype)


# --------------------------------------------------------------------------
# Wrapper
# --------------------------------------------------------------------------
def _prep_params(params, n_heads, compute_dtype=jnp.bfloat16):
    """Host-side weight re-layout: transpose, fuse QKV group/head-major,
    fold 1/sqrt(D) into q, cast MXU operands to bf16."""
    C = params["wq"].shape[0]
    assert C % n_heads == 0
    D = C // n_heads
    scale = 1.0 / math.sqrt(D)

    def head_major(w):  # nn.Linear W:(out,in) -> W.T split per head: (H, C, D)
        return jnp.transpose(w.T.reshape(C, n_heads, D), (1, 0, 2))

    w_qkv = jnp.concatenate(
        [head_major(params["wq"]) * scale,
         head_major(params["wk"]),
         head_major(params["wv"])], axis=0)                      # (3H, C, D)
    b_qkv = jnp.concatenate(
        [(params["bq"] * scale).reshape(n_heads, 1, D),
         params["bk"].reshape(n_heads, 1, D),
         params["bv"].reshape(n_heads, 1, D)], axis=0)           # (3H, 1, D)
    w_out = params["wp"].T.reshape(n_heads, D, C)                # (H, D, C)
    b_out = params["bp"].reshape(1, C)

    return (w_qkv.astype(compute_dtype), b_qkv.astype(jnp.float32),
            w_out.astype(compute_dtype), b_out.astype(jnp.float32))


def _causal_block_mask(batch_block, T):
    """(R, R) additive mask: causal within each sequence, block-diagonal
    across the batch elements packed into one grid step."""
    tril = jnp.tril(jnp.ones((T, T), jnp.float32))
    blk = jnp.kron(jnp.eye(batch_block, dtype=jnp.float32), tril)
    return jnp.where(blk > 0, 0.0, _NEG_INF).astype(jnp.float32)


def _pick_batch_block(B, T):
    # Many projection rows per grid step (MXU row fill), but keep the grid
    # >= 2 steps so both v7x TensorCores get work, and keep the (Bb*T)^2
    # score tile modest.
    bb = min(max(1, B // 2), max(1, 256 // T))
    while bb > 1 and B % bb:
        bb -= 1
    return bb


def masked_causal_attention(x, params, n_heads, *, batch_block=None):
    """x: (B, T, C) float32.  params: PyTorch-layout weights (W:(out,in), b:(out,))."""
    B, T, C = x.shape
    if batch_block is None:
        batch_block = _pick_batch_block(B, T)
    assert B % batch_block == 0
    R = batch_block * T
    D = C // n_heads

    w_qkv, b_qkv, w_out, b_out = _prep_params(params, n_heads)
    mask = _causal_block_mask(batch_block, T)

    x_spec = pl.BlockSpec((batch_block, T, C), lambda i: (i, 0, 0))
    const2 = lambda i: (0, 0)
    const3 = lambda i: (0, 0, 0)

    return pl.pallas_call(
        _mca_kernel,
        out_shape=jax.ShapeDtypeStruct((B, T, C), x.dtype),
        grid_spec=pltpu.PrefetchScalarGridSpec(
            num_scalar_prefetch=0,
            grid=(B // batch_block,),
            in_specs=[x_spec,
                      pl.BlockSpec((R, R), const2),                  # mask
                      pl.BlockSpec((3 * n_heads, C, D), const3),     # w_qkv
                      pl.BlockSpec((3 * n_heads, 1, D), const3),     # b_qkv
                      pl.BlockSpec((n_heads, D, C), const3),         # w_out
                      pl.BlockSpec((1, C), const2)],                 # b_out
            out_specs=x_spec,
        ),
        compiler_params=pltpu.CompilerParams(
            dimension_semantics=("parallel",)),
    )(x, mask, w_qkv, b_qkv, w_out, b_out)


# --------------------------------------------------------------------------
# Reference / test
# --------------------------------------------------------------------------
def _init_linear(key, out_dim, in_dim):
    # nn.Linear default init: U(-1/sqrt(in), 1/sqrt(in)); bias shape (out_dim,).
    kw, kb = jax.random.split(key)
    bound = 1.0 / math.sqrt(in_dim)
    w = jax.random.uniform(kw, (out_dim, in_dim), jnp.float32, -bound, bound)
    b = jax.random.uniform(kb, (out_dim,), jnp.float32, -bound, bound)
    return w, b


def _reference(x, params, n_heads):
    """Pure-JAX f32 reference mirroring the PyTorch forward (eval mode)."""
    B, T, C = x.shape
    D = C // n_heads
    lin = lambda a, w, b: a @ w.T + b
    q = lin(x, params["wq"], params["bq"]).reshape(B, T, n_heads, D).transpose(0, 2, 1, 3)
    k = lin(x, params["wk"], params["bk"]).reshape(B, T, n_heads, D).transpose(0, 2, 1, 3)
    v = lin(x, params["wv"], params["bv"]).reshape(B, T, n_heads, D).transpose(0, 2, 1, 3)
    w = jnp.einsum("bhqd,bhkd->bhqk", q, k) / math.sqrt(D)
    mask = jnp.tril(jnp.ones((T, T), jnp.float32))[None, None]
    w = jnp.where(mask == 0, -jnp.inf, w)
    p = jax.nn.softmax(w, axis=-1)
    att = jnp.einsum("bhqk,bhkd->bhqd", p, v).transpose(0, 2, 1, 3).reshape(B, T, C)
    return lin(att, params["wp"], params["bp"])


if __name__ == "__main__":
    hidden_dim = 32
    context_len = 8
    n_heads = 2
    B, T, C = 2, context_len, hidden_dim

    key = jax.random.PRNGKey(0)
    kx, kq, kk, kv, kp = jax.random.split(key, 5)

    x = jax.random.normal(kx, (B, T, C), jnp.float32)

    wq, bq = _init_linear(kq, C, C)
    wk, bk = _init_linear(kk, C, C)
    wv, bv = _init_linear(kv, C, C)
    wp, bp = _init_linear(kp, C, C)
    params = dict(wq=wq, bq=bq, wk=wk, bk=bk, wv=wv, bv=bv, wp=wp, bp=bp)

    out = jax.block_until_ready(masked_causal_attention(x, params, n_heads))
    ref = jax.block_until_ready(_reference(x, params, n_heads))

    assert out.shape == (B, T, C)
    # bf16 MXU operands + approx reciprocal -> looser tolerance than pure f32.
    assert jnp.allclose(out, ref, atol=3e-2, rtol=3e-2), "mismatch vs reference"

    print("KERNEL_OK")
</pallas_src>

<mosaic_0001>
module attributes {stable_mosaic.version = 11 : i64} {
  func.func @_mca_kernel(%arg0: i32, %arg1: memref<1x8x32xf32, #tpu.memory_space<vmem>>, %arg2: memref<8x8xf32, #tpu.memory_space<vmem>>, %arg3: memref<6x32x16xbf16, #tpu.memory_space<vmem>>, %arg4: memref<6x1x16xf32, #tpu.memory_space<vmem>>, %arg5: memref<2x16x32xbf16, #tpu.memory_space<vmem>>, %arg6: memref<1x32xf32, #tpu.memory_space<vmem>>, %arg7: memref<1x8x32xf32, #tpu.memory_space<vmem>>) attributes {dimension_semantics = [#tpu.dimension_semantics<parallel>], iteration_bounds = array<i64: 2>, scalar_prefetch = 0 : i64, scratch_operands = 0 : i64, tpu.core_type = #tpu.core_type<tc>, window_params = [{transform_indices = @transform_0, window_bounds = array<i64: 1, 8, 32>}, {pipeline_mode = #tpu.pipeline_mode<synchronous>, transform_indices = @transform_1, window_bounds = array<i64: 8, 8>}, {pipeline_mode = #tpu.pipeline_mode<synchronous>, transform_indices = @transform_2, window_bounds = array<i64: 6, 32, 16>}, {pipeline_mode = #tpu.pipeline_mode<synchronous>, transform_indices = @transform_3, window_bounds = array<i64: 6, 1, 16>}, {pipeline_mode = #tpu.pipeline_mode<synchronous>, transform_indices = @transform_4, window_bounds = array<i64: 2, 16, 32>}, {pipeline_mode = #tpu.pipeline_mode<synchronous>, transform_indices = @transform_5, window_bounds = array<i64: 1, 32>}, {transform_indices = @transform_6, window_bounds = array<i64: 1, 8, 32>}]} {
    %c0 = arith.constant 0 : index
    %c0_0 = arith.constant 0 : index
    %c0_1 = arith.constant 0 : index
    %0 = vector.load %arg1[%c0, %c0_0, %c0_1] : memref<1x8x32xf32, #tpu.memory_space<vmem>>, vector<1x8x32xf32>
    %1 = vector.shape_cast %0 : vector<1x8x32xf32> to vector<8x32xf32>
    %2 = arith.truncf %1 : vector<8x32xf32> to vector<8x32xbf16>
    %3 = vector.shape_cast %2 : vector<8x32xbf16> to vector<1x8x32xbf16>
    %4 = vector.shape_cast %3 : vector<1x8x32xbf16> to vector<1x8x32xbf16>
    %5 = vector.broadcast %4 : vector<1x8x32xbf16> to vector<6x8x32xbf16>
    %c0_2 = arith.constant 0 : index
    %c0_3 = arith.constant 0 : index
    %c0_4 = arith.constant 0 : index
    %6 = vector.load %arg3[%c0_2, %c0_3, %c0_4] : memref<6x32x16xbf16, #tpu.memory_space<vmem>>, vector<6x32x16xbf16>
    "tpu.trace_start"() <{level = 10 : i32, message = "grc,gcd->grd"}> : () -> ()
    %cst = arith.constant dense<0.000000e+00> : vector<6x8x16xf32>
    %7 = tpu.matmul %5, %6, %cst {dimension_numbers = #tpu.dot_dimension_numbers<[2], [1], [1], [2], [0, 0, 0, 1, 1, 2], [0], [0]>} : vector<6x8x32xbf16>, vector<6x32x16xbf16>, vector<6x8x16xf32> -> vector<6x8x16xf32>
    "tpu.trace_stop"() : () -> ()
    %c0_5 = arith.constant 0 : index
    %c0_6 = arith.constant 0 : index
    %c0_7 = arith.constant 0 : index
    %8 = vector.load %arg4[%c0_5, %c0_6, %c0_7] : memref<6x1x16xf32, #tpu.memory_space<vmem>>, vector<6x1x16xf32>
    %9 = vector.broadcast %8 : vector<6x1x16xf32> to vector<6x8x16xf32>
    %10 = arith.addf %7, %9 : vector<6x8x16xf32>
    %11 = vector.extract_strided_slice %10 {offsets = [0, 0, 0], sizes = [2, 8, 16], strides = [1, 1, 1]} : vector<6x8x16xf32> to vector<2x8x16xf32>
    %12 = arith.truncf %11 : vector<2x8x16xf32> to vector<2x8x16xbf16>
    %13 = vector.extract_strided_slice %10 {offsets = [2, 0, 0], sizes = [2, 8, 16], strides = [1, 1, 1]} : vector<6x8x16xf32> to vector<2x8x16xf32>
    %14 = arith.truncf %13 : vector<2x8x16xf32> to vector<2x8x16xbf16>
    %15 = vector.extract_strided_slice %10 {offsets = [4, 0, 0], sizes = [2, 8, 16], strides = [1, 1, 1]} : vector<6x8x16xf32> to vector<2x8x16xf32>
    %16 = arith.truncf %15 : vector<2x8x16xf32> to vector<2x8x16xbf16>
    "tpu.trace_start"() <{level = 10 : i32, message = "hrd,hsd->hrs"}> : () -> ()
    %cst_8 = arith.constant dense<0.000000e+00> : vector<2x8x8xf32>
    %17 = tpu.matmul %12, %14, %cst_8 {dimension_numbers = #tpu.dot_dimension_numbers<[2], [2], [1], [1], [0, 0, 0, 1, 1, 1], [0], [0]>} : vector<2x8x16xbf16>, vector<2x8x16xbf16>, vector<2x8x8xf32> -> vector<2x8x8xf32>
    "tpu.trace_stop"() : () -> ()
    %c0_9 = arith.constant 0 : index
    %c0_10 = arith.constant 0 : index
    %18 = vector.load %arg2[%c0_9, %c0_10] : memref<8x8xf32, #tpu.memory_space<vmem>>, vector<8x8xf32>
    %19 = vector.shape_cast %18 : vector<8x8xf32> to vector<1x8x8xf32>
    %20 = vector.broadcast %19 : vector<1x8x8xf32> to vector<2x8x8xf32>
    %21 = arith.addf %17, %20 : vector<2x8x8xf32>
    %cst_11 = arith.constant dense<0xFF800000> : vector<2x8xf32>
    %22 = vector.multi_reduction <maximumf>, %21, %cst_11 [2] : vector<2x8x8xf32> to vector<2x8xf32>
    %23 = vector.shape_cast %22 : vector<2x8xf32> to vector<2x8x1xf32>
    %24 = vector.broadcast %23 : vector<2x8x1xf32> to vector<2x8x8xf32>
    %25 = arith.subf %21, %24 : vector<2x8x8xf32>
    %26 = math.exp %25 : vector<2x8x8xf32>
    %cst_12 = arith.constant dense<0.000000e+00> : vector<2x8xf32>
    %27 = vector.multi_reduction <add>, %26, %cst_12 [2] : vector<2x8x8xf32> to vector<2x8xf32>
    %28 = vector.shape_cast %27 : vector<2x8xf32> to vector<2x8x1xf32>
    %29 = tpu.reciprocal %28 {approx = true} : vector<2x8x1xf32> -> vector<2x8x1xf32>
    %30 = vector.broadcast %29 : vector<2x8x1xf32> to vector<2x8x8xf32>
    %31 = arith.mulf %26, %30 : vector<2x8x8xf32>
    %32 = arith.truncf %31 : vector<2x8x8xf32> to vector<2x8x8xbf16>
    "tpu.trace_start"() <{level = 10 : i32, message = "hrs,hsd->hrd"}> : () -> ()
    %cst_13 = arith.constant dense<0.000000e+00> : vector<2x8x16xf32>
    %33 = tpu.matmul %32, %16, %cst_13 {dimension_numbers = #tpu.dot_dimension_numbers<[2], [1], [1], [2], [0, 0, 0, 1, 1, 2], [0], [0]>} : vector<2x8x8xbf16>, vector<2x8x16xbf16>, vector<2x8x16xf32> -> vector<2x8x16xf32>
    "tpu.trace_stop"() : () -> ()
    %34 = arith.truncf %33 : vector<2x8x16xf32> to vector<2x8x16xbf16>
    %c0_14 = arith.constant 0 : index
    %c0_15 = arith.constant 0 : index
    %c0_16 = arith.constant 0 : index
    %35 = vector.load %arg5[%c0_14, %c0_15, %c0_16] : memref<2x16x32xbf16, #tpu.memory_space<vmem>>, vector<2x16x32xbf16>
    "tpu.trace_start"() <{level = 10 : i32, message = "hrd,hdc->hrc"}> : () -> ()
    %cst_17 = arith.constant dense<0.000000e+00> : vector<2x8x32xf32>
    %36 = tpu.matmul %34, %35, %cst_17 {dimension_numbers = #tpu.dot_dimension_numbers<[2], [1], [1], [2], [0, 0, 0, 1, 1, 2], [0], [0]>} : vector<2x8x16xbf16>, vector<2x16x32xbf16>, vector<2x8x32xf32> -> vector<2x8x32xf32>
    "tpu.trace_stop"() : () -> ()
    %37 = vector.extract_strided_slice %36 {offsets = [0, 0, 0], sizes = [1, 8, 32], strides = [1, 1, 1]} : vector<2x8x32xf32> to vector<1x8x32xf32>
    %38 = vector.shape_cast %37 : vector<1x8x32xf32> to vector<8x32xf32>
    %39 = vector.extract_strided_slice %36 {offsets = [1, 0, 0], sizes = [1, 8, 32], strides = [1, 1, 1]} : vector<2x8x32xf32> to vector<1x8x32xf32>
    %40 = vector.shape_cast %39 : vector<1x8x32xf32> to vector<8x32xf32>
    %41 = arith.addf %38, %40 : vector<8x32xf32>
    %c0_18 = arith.constant 0 : index
    %c0_19 = arith.constant 0 : index
    %42 = vector.load %arg6[%c0_18, %c0_19] : memref<1x32xf32, #tpu.memory_space<vmem>>, vector<1x32xf32>
    %43 = vector.broadcast %42 : vector<1x32xf32> to vector<8x32xf32>
    %44 = arith.addf %41, %43 : vector<8x32xf32>
    %45 = vector.shape_cast %44 : vector<8x32xf32> to vector<1x8x32xf32>
    %c0_20 = arith.constant 0 : index
    %c0_21 = arith.constant 0 : index
    %c0_22 = arith.constant 0 : index
    %46 = vector.load %arg7[%c0_20, %c0_21, %c0_22] : memref<1x8x32xf32, #tpu.memory_space<vmem>>, vector<1x8x32xf32>
    tpu.vector_store %arg7[%c0_20, %c0_21, %c0_22], %45 {strides = array<i32>} : memref<1x8x32xf32, #tpu.memory_space<vmem>>, vector<1x8x32xf32>,
    return
  }
  func.func @transform_0(%arg0: i32) -> (i32, i32, i32) {
    %c0_i32 = arith.constant 0 : i32
    %c0_i32_0 = arith.constant 0 : i32
    %c0_i32_1 = arith.constant 0 : i32
    return %arg0, %c0_i32, %c0_i32_0 : i32, i32, i32
  }
  func.func @transform_1(%arg0: i32) -> (i32, i32) {
    %c0_i32 = arith.constant 0 : i32
    %c0_i32_0 = arith.constant 0 : i32
    %c0_i32_1 = arith.constant 0 : i32
    return %c0_i32, %c0_i32_0 : i32, i32
  }
  func.func @transform_2(%arg0: i32) -> (i32, i32, i32) {
    %c0_i32 = arith.constant 0 : i32
    %c0_i32_0 = arith.constant 0 : i32
    %c0_i32_1 = arith.constant 0 : i32
    %c0_i32_2 = arith.constant 0 : i32
    return %c0_i32, %c0_i32_0, %c0_i32_1 : i32, i32, i32
  }
  func.func @transform_3(%arg0: i32) -> (i32, i32, i32) {
    %c0_i32 = arith.constant 0 : i32
    %c0_i32_0 = arith.constant 0 : i32
    %c0_i32_1 = arith.constant 0 : i32
    %c0_i32_2 = arith.constant 0 : i32
    return %c0_i32, %c0_i32_0, %c0_i32_1 : i32, i32, i32
  }
  func.func @transform_4(%arg0: i32) -> (i32, i32, i32) {
    %c0_i32 = arith.constant 0 : i32
    %c0_i32_0 = arith.constant 0 : i32
    %c0_i32_1 = arith.constant 0 : i32
    %c0_i32_2 = arith.constant 0 : i32
    return %c0_i32, %c0_i32_0, %c0_i32_1 : i32, i32, i32
  }
  func.func @transform_5(%arg0: i32) -> (i32, i32) {
    %c0_i32 = arith.constant 0 : i32
    %c0_i32_0 = arith.constant 0 : i32
    %c0_i32_1 = arith.constant 0 : i32
    return %c0_i32, %c0_i32_0 : i32, i32
  }
  func.func @transform_6(%arg0: i32) -> (i32, i32, i32) {
    %c0_i32 = arith.constant 0 : i32
    %c0_i32_0 = arith.constant 0 : i32
    %c0_i32_1 = arith.constant 0 : i32
    return %arg0, %c0_i32, %c0_i32_0 : i32, i32, i32
  }
}

</mosaic_0001>

<llo_original>
// kernel: tpu_custom_call.1
$region0: #{tpu_custom_call.1}
  #allocation0 [shape = 'u32[]', space=smem, size = 0x4, offset = 0x4, fixed_abs, tag = 'smem constant byte address 0x4 - core index']
  #allocation1 [shape = 'u32[144,128]{1,0:T(1,128)}', space=vmem, size = 0x12000, scoped, tag = 'internal scratch']
  %s0 = inlined_call_operand.vmem [shape: f32[2,8,32], index: 0, kind: input, shape index: {}]
  %s1 = inlined_call_operand.vmem [shape: f32[8,8], index: 1, kind: input, shape index: {}]
  %s2 = inlined_call_operand.vmem [shape: bf16[6,32,16], index: 2, kind: input, shape index: {}]
  %s3 = inlined_call_operand.vmem [shape: f32[6,1,16], index: 3, kind: input, shape index: {}]
  %s4 = inlined_call_operand.vmem [shape: bf16[2,16,32], index: 4, kind: input, shape index: {}]
  %s5 = inlined_call_operand.vmem [shape: f32[1,32], index: 5, kind: input, shape index: {}]
  %s6 = inlined_call_operand.hbm [shape: f32[2,8,32], index: 6, kind: output, shape index: {}]
  %s7 = sld [smem:[#allocation0]]
  $region57: #{tpu_custom_call.1} parent=0
    _
  %s9 = ssub.s32 1, %s7
  %s10 = scalar_select 0, %s9, %s7
  $region1: #{tpu_custom_call.1} parent=0
    #allocation2 [shape = 'u8[8192]{0}', space=vmem, size = 0x2000, scoped, tag = 'output window, operand 0']
    #allocation3 [shape = 's32[2]{0}', space=sflag, size = 0x8, scoped, tag = 'scoped memory for tpu_custom_call.1']
    %11 = vsyncpa [#allocation3], 0
    %s12 = scalar_lea.sflag [#allocation3], 1
    %13 = vsyncpa %s12, 0
    loop: start=0, step=1, limit=4
    $region2: #{tpu_custom_call.1} parent=1 // loop_pre_header
      _
    $region3: #{tpu_custom_call.1} parent=1 // loop_header
      %s15 = sphi 0, %s19
      %p16 = scmp.ge.s32.totalorder %s15, 4
      %s25 = sphi 0, %s27
      %s28 = sphi 0, %s25
      %s29 = sphi 0, %s28
      %s45 = sphi 0, %s29
      %s49 = sphi 0, %s49
      %s51 = sphi 0, %s49
      %s52 = sphi 0, %s51
      %s66 = sphi 0, %s52
      %s70 = sphi 0, %s70
      %s72 = sphi 0, %s70
      %s73 = sphi 0, %s72
      %s87 = sphi 0, %s73
      %s91 = sphi 0, %s91
      %s93 = sphi 0, %s91
      %s94 = sphi 0, %s93
      %s108 = sphi 0, %s94
      %s112 = sphi 0, %s112
      %s114 = sphi 0, %s112
      %s115 = sphi 0, %s114
      %s129 = sphi 0, %s115
      %s133 = sphi 0, %s133
      %s135 = sphi 0, %s133
      %s136 = sphi 0, %s135
      %s150 = sphi 0, %s136
      %s156 = sphi 0, %s158
      %s159 = sphi 0, %s156
      %s160 = sphi 0, %s159
      %s176 = sphi 0, %s160
    $region4: #{tpu_custom_call.1} parent=1 // loop_header_branch
      %18 = sbr.rel (%p16) target = $region8
    $region5: #{tpu_custom_call.1} parent=1 // loop_body
      %s20 = ssub.s32 %s15, 1
      %s21 = ssub.s32 %s15, 2
      %s22 = sadd.s32 %s15, 1
      %s23 = ssub.s32 %s15, %s22
      %p24 = scmp.eq.s32.totalorder %s23, 0
      %s26 = sadd.s32 %s25, 1
      %s27 = scalar_select %p24, %s25, %s26
      %p30 = pneg %p24
      %p31 = scmp.eq.s32.totalorder %s15, 1
      %p32 = por %p30, %p31
      %p33 = scmp.ne.s32.totalorder %s25, %s28
      %p34 = scmp.eq.s32.totalorder %s15, 0
      %p35 = por %p33, %p34
      %p36 = scmp.ne.s32.totalorder %s25, %s28
      %p37 = scmp.eq.s32.totalorder %s20, 1
      %p38 = por %p36, %p37
      %p39 = scmp.ne.s32.totalorder %s28, %s29
      %p40 = scmp.eq.s32.totalorder %s20, 0
      %p41 = por %p39, %p40
      %p42 = scmp.ne.s32.totalorder %s28, %s29
      %p43 = scmp.eq.s32.totalorder %s21, 1
      %p44 = por %p42, %p43
      %p46 = scmp.ne.s32.totalorder %s29, %s45
      %p47 = scmp.eq.s32.totalorder %s21, 0
      %p48 = por %p46, %p47
      %s50 = sadd.s32 %s49, 1
      %p53 = scmp.eq.s32.totalorder %s15, 1
      %p54 = scmp.ne.s32.totalorder %s49, %s51
      %p55 = scmp.eq.s32.totalorder %s15, 0
      %p56 = por %p54, %p55
      %p57 = scmp.ne.s32.totalorder %s49, %s51
      %p58 = scmp.eq.s32.totalorder %s20, 1
      %p59 = por %p57, %p58
      %p60 = scmp.ne.s32.totalorder %s51, %s52
      %p61 = scmp.eq.s32.totalorder %s20, 0
      %p62 = por %p60, %p61
      %p63 = scmp.ne.s32.totalorder %s51, %s52
      %p64 = scmp.eq.s32.totalorder %s21, 1
      %p65 = por %p63, %p64
      %p67 = scmp.ne.s32.totalorder %s52, %s66
      %p68 = scmp.eq.s32.totalorder %s21, 0
      %p69 = por %p67, %p68
      %s71 = sadd.s32 %s70, 1
      %p74 = scmp.eq.s32.totalorder %s15, 1
      %p75 = scmp.ne.s32.totalorder %s70, %s72
      %p76 = scmp.eq.s32.totalorder %s15, 0
      %p77 = por %p75, %p76
      %p78 = scmp.ne.s32.totalorder %s70, %s72
      %p79 = scmp.eq.s32.totalorder %s20, 1
      %p80 = por %p78, %p79
      %p81 = scmp.ne.s32.totalorder %s72, %s73
      %p82 = scmp.eq.s32.totalorder %s20, 0
      %p83 = por %p81, %p82
      %p84 = scmp.ne.s32.totalorder %s72, %s73
      %p85 = scmp.eq.s32.totalorder %s21, 1
      %p86 = por %p84, %p85
      %p88 = scmp.ne.s32.totalorder %s73, %s87
      %p89 = scmp.eq.s32.totalorder %s21, 0
      %p90 = por %p88, %p89
      %s92 = sadd.s32 %s91, 1
      %p95 = scmp.eq.s32.totalorder %s15, 1
      %p96 = scmp.ne.s32.totalorder %s91, %s93
      %p97 = scmp.eq.s32.totalorder %s15, 0
      %p98 = por %p96, %p97
      %p99 = scmp.ne.s32.totalorder %s91, %s93
      %p100 = scmp.eq.s32.totalorder %s20, 1
      %p101 = por %p99, %p100
      %p102 = scmp.ne.s32.totalorder %s93, %s94
      %p103 = scmp.eq.s32.totalorder %s20, 0
      %p104 = por %p102, %p103
      %p105 = scmp.ne.s32.totalorder %s93, %s94
      %p106 = scmp.eq.s32.totalorder %s21, 1
      %p107 = por %p105, %p106
      %p109 = scmp.ne.s32.totalorder %s94, %s108
      %p110 = scmp.eq.s32.totalorder %s21, 0
      %p111 = por %p109, %p110
      %s113 = sadd.s32 %s112, 1
      %p116 = scmp.eq.s32.totalorder %s15, 1
      %p117 = scmp.ne.s32.totalorder %s112, %s114
      %p118 = scmp.eq.s32.totalorder %s15, 0
      %p119 = por %p117, %p118
      %p120 = scmp.ne.s32.totalorder %s112, %s114
      %p121 = scmp.eq.s32.totalorder %s20, 1
      %p122 = por %p120, %p121
      %p123 = scmp.ne.s32.totalorder %s114, %s115
      %p124 = scmp.eq.s32.totalorder %s20, 0
      %p125 = por %p123, %p124
      %p126 = scmp.ne.s32.totalorder %s114, %s115
      %p127 = scmp.eq.s32.totalorder %s21, 1
      %p128 = por %p126, %p127
      %p130 = scmp.ne.s32.totalorder %s115, %s129
      %p131 = scmp.eq.s32.totalorder %s21, 0
      %p132 = por %p130, %p131
      %s134 = sadd.s32 %s133, 1
      %p137 = scmp.eq.s32.totalorder %s15, 1
      %p138 = scmp.ne.s32.totalorder %s133, %s135
      %p139 = scmp.eq.s32.totalorder %s15, 0
      %p140 = por %p138, %p139
      %p141 = scmp.ne.s32.totalorder %s133, %s135
      %p142 = scmp.eq.s32.totalorder %s20, 1
      %p143 = por %p141, %p142
      %p144 = scmp.ne.s32.totalorder %s135, %s136
      %p145 = scmp.eq.s32.totalorder %s20, 0
      %p146 = por %p144, %p145
      %p147 = scmp.ne.s32.totalorder %s135, %s136
      %p148 = scmp.eq.s32.totalorder %s21, 1
      %p149 = por %p147, %p148
      %p151 = scmp.ne.s32.totalorder %s136, %s150
      %p152 = scmp.eq.s32.totalorder %s21, 0
      %p153 = por %p151, %p152
      %s154 = ssub.s32 %s15, %s22
      %p155 = scmp.eq.s32.totalorder %s154, 0
      %s157 = sadd.s32 %s156, 1
      %s158 = scalar_select %p155, %s156, %s157
      %p161 = pneg %p155
      %p162 = scmp.eq.s32.totalorder %s15, 1
      %p163 = por %p161, %p162
      %p164 = scmp.ne.s32.totalorder %s156, %s159
      %p165 = scmp.eq.s32.totalorder %s15, 0
      %p166 = por %p164, %p165
      %p167 = scmp.ne.s32.totalorder %s156, %s159
      %p168 = scmp.eq.s32.totalorder %s20, 1
      %p169 = por %p167, %p168
      %p170 = scmp.ne.s32.totalorder %s159, %s160
      %p171 = scmp.eq.s32.totalorder %s20, 0
      %p172 = por %p170, %p171
      %p173 = scmp.ne.s32.totalorder %s159, %s160
      %p174 = scmp.eq.s32.totalorder %s21, 1
      %p175 = por %p173, %p174
      %p177 = scmp.ne.s32.totalorder %s160, %s176
      %p178 = scmp.eq.s32.totalorder %s21, 0
      %p179 = por %p177, %p178
      %p180 = scmp.le.s32.totalorder 1, %s15
      %p181 = scmp.lt.s32.totalorder %s15, 3
      %p182 = pnand %p180, %p181
      %p183 = pneg %p182
      // Predicated region
      $region9: #{tpu_custom_call.1} parent=5 // pred_check
        _
      $region10: #{tpu_custom_call.1} parent=5 // pred_check_branch
        %185 = sbr.rel (%p182) target = $region12
      $region11: #{tpu_custom_call.1} parent=5 // pred_region
        %s186 = ssub.s32 %s15, 1
        // Predicated region
        $region13: #{tpu_custom_call.1} parent=11 // pred_check
          %p187 = pneg %p62
        $region14: #{tpu_custom_call.1} parent=11 // pred_check_branch
          %189 = sbr.rel (%p187) target = $region16
        $region15: #{tpu_custom_call.1} parent=11 // pred_region
          _
        $region16: #{tpu_custom_call.1} parent=11 // pred_fallthru
          _
        // Predicated region
        $region17: #{tpu_custom_call.1} parent=11 // pred_check
          %p190 = pneg %p83
        $region18: #{tpu_custom_call.1} parent=11 // pred_check_branch
          %192 = sbr.rel (%p190) target = $region20
        $region19: #{tpu_custom_call.1} parent=11 // pred_region
          _
        $region20: #{tpu_custom_call.1} parent=11 // pred_fallthru
          _
        // Predicated region
        $region21: #{tpu_custom_call.1} parent=11 // pred_check
          %p193 = pneg %p104
        $region22: #{tpu_custom_call.1} parent=11 // pred_check_branch
          %195 = sbr.rel (%p193) target = $region24
        $region23: #{tpu_custom_call.1} parent=11 // pred_region
          _
        $region24: #{tpu_custom_call.1} parent=11 // pred_fallthru
          _
        // Predicated region
        $region25: #{tpu_custom_call.1} parent=11 // pred_check
          %p196 = pneg %p125
        $region26: #{tpu_custom_call.1} parent=11 // pred_check_branch
          %198 = sbr.rel (%p196) target = $region28
        $region27: #{tpu_custom_call.1} parent=11 // pred_region
          _
        $region28: #{tpu_custom_call.1} parent=11 // pred_fallthru
          _
        // Predicated region
        $region29: #{tpu_custom_call.1} parent=11 // pred_check
          %p199 = pneg %p146
        $region30: #{tpu_custom_call.1} parent=11 // pred_check_branch
          %201 = sbr.rel (%p199) target = $region32
        $region31: #{tpu_custom_call.1} parent=11 // pred_region
          _
        $region32: #{tpu_custom_call.1} parent=11 // pred_fallthru
          _
      $region12: #{tpu_custom_call.1} parent=5 // pred_fallthru
        _
      %p202 = scmp.lt.s32.totalorder %s15, 2
      // Predicated region
      $region33: #{tpu_custom_call.1} parent=5 // pred_check
        %p203 = pneg %p202
      $region34: #{tpu_custom_call.1} parent=5 // pred_check_branch
        %205 = sbr.rel (%p203) target = $region36
      $region35: #{tpu_custom_call.1} parent=5 // pred_region
        // Predicated region
        $region37: #{tpu_custom_call.1} parent=35 // pred_check
          %p206 = pneg %p35
        $region38: #{tpu_custom_call.1} parent=35 // pred_check_branch
          %208 = sbr.rel (%p206) target = $region40
        $region39: #{tpu_custom_call.1} parent=35 // pred_region
          %p209 = scmp.lt.s32.totalorder %s15, 1
          %s210 = scalar_select %p209, %s15, 1
          %s211 = smul.addr %s210, 8
          %s212 = scalar_lea.vmem %s0, %s211
        $region40: #{tpu_custom_call.1} parent=35 // pred_fallthru
          _
      $region36: #{tpu_custom_call.1} parent=5 // pred_fallthru
        _
      %p213 = scmp.le.s32.totalorder 1, %s15
      %p214 = scmp.lt.s32.totalorder %s15, 3
      %p215 = pnand %p213, %p214
      %p216 = pneg %p215
      // Predicated region
      $region41: #{tpu_custom_call.1} parent=5 // pred_check
        _
      $region42: #{tpu_custom_call.1} parent=5 // pred_check_branch
        %218 = sbr.rel (%p215) target = $region44
      $region43: #{tpu_custom_call.1} parent=5 // pred_region
        %s219 = ssub.s32 %s15, 1
        %p220 = scmp.lt.s32.totalorder %s20, 1
        %s221 = scalar_select %p220, %s20, 1
        %s222 = smul.addr %s221, 8
        %s223 = scalar_lea.vmem %s0, %s222
        %p224 = pneg %p41
        %p225 = pneg %p38
        %p226 = pneg %p62
        %p227 = pneg %p59
        %p228 = pneg %p83
        %p229 = pneg %p80
        %p230 = pneg %p104
        %p231 = pneg %p101
        %p232 = pneg %p125
        %p233 = pneg %p122
        %p234 = pneg %p146
        %p235 = pneg %p143
        %p236 = pneg %p172
        %p237 = pneg %p169
        %s238 = sand.u32 %s159, 1
        %s239 = scalar_lea.sflag [#allocation3], %s238
        %s240 = sand.u32 %s159, 1
        %s241 = smul.addr %s240, 8
        %s242 = scalar_lea.vmem [#allocation2], %s241
        %p243 = scmp.lt.s32.totalorder %s20, 1
        %s244 = scalar_select %p243, %s20, 1
        %s245 = smul.addr %s244, 8
        %s246 = scalar_lea.vmem %s0, %s245
        %v248 = vld [vmem:[%s246] sm:$0xff]
        %v249 = vpack.c.bf16 %v248, %v248
        %v250 = vld [vmem:[%s2] sm:$0xf]
        %v251 = vld [vmem:[%s2 + $0x4] sm:$0xf]
        %v252 = vld [vmem:[%s2 + $0x8] sm:$0xf]
        %v253 = vld [vmem:[%s2 + $0xc] sm:$0xf]
        %v254 = vld [vmem:[%s2 + $0x10] sm:$0xf]
        %v255 = vld [vmem:[%s2 + $0x14] sm:$0xf]
        %v256 = vld [vmem:[%s2 + $0x18] sm:$0xf]
        %v257 = vld [vmem:[%s2 + $0x1c] sm:$0xf]
        %v258 = vld [vmem:[%s2 + $0x20] sm:$0xf]
        %v259 = vld [vmem:[%s2 + $0x24] sm:$0xf]
        %v260 = vld [vmem:[%s2 + $0x28] sm:$0xf]
        %v261 = vld [vmem:[%s2 + $0x2c] sm:$0xf]
        %v262 = vld [vmem:[%s2 + $0x30] sm:$0xf]
        %v263 = vld [vmem:[%s2 + $0x34] sm:$0xf]
        %v264 = vld [vmem:[%s2 + $0x38] sm:$0xf]
        %v265 = vld [vmem:[%s2 + $0x3c] sm:$0xf]
        %v266 = vld [vmem:[%s2 + $0x40] sm:$0xf]
        %v267 = vld [vmem:[%s2 + $0x44] sm:$0xf]
        %v268 = vld [vmem:[%s2 + $0x48] sm:$0xf]
        %v269 = vld [vmem:[%s2 + $0x4c] sm:$0xf]
        %v270 = vld [vmem:[%s2 + $0x50] sm:$0xf]
        %v271 = vld [vmem:[%s2 + $0x54] sm:$0xf]
        %v272 = vld [vmem:[%s2 + $0x58] sm:$0xf]
        %v273 = vld [vmem:[%s2 + $0x5c] sm:$0xf]
        %v274 = vld [vmem:[%s3] sm:$0x1]
        %v275 = vld [vmem:[%s3 + $0x1] sm:$0x1]
        %v276 = vld [vmem:[%s3 + $0x2] sm:$0x1]
        %v277 = vld [vmem:[%s3 + $0x3] sm:$0x1]
        %v278 = vld [vmem:[%s3 + $0x4] sm:$0x1]
        %v279 = vld [vmem:[%s3 + $0x5] sm:$0x1]
        %v286 = vlaneseq
        %v287 = vshrl.u32 %v286, 7
        %v288 = vsub.s32 0, %v287
        %v289 = vrot.slane %v274, %v288
        %v290 = vlaneseq
        %v291 = vshrl.u32 %v290, 7
        %v292 = vsub.s32 0, %v291
        %v293 = vrot.slane %v275, %v292
        %v294 = vlaneseq
        %v295 = vshrl.u32 %v294, 7
        %v296 = vsub.s32 0, %v295
        %v297 = vrot.slane %v276, %v296
        %v298 = vlaneseq
        %v299 = vshrl.u32 %v298, 7
        %v300 = vsub.s32 0, %v299
        %v301 = vrot.slane %v277, %v300
        %v302 = vlaneseq
        %v303 = vshrl.u32 %v302, 7
        %v304 = vsub.s32 0, %v303
        %v305 = vrot.slane %v278, %v304
        %v306 = vlaneseq
        %v307 = vshrl.u32 %v306, 7
        %v308 = vsub.s32 0, %v307
        %v309 = vrot.slane %v279, %v308
        %v320 = vunpack.c.l.b16 %v250
        %v321 = vunpack.c.l.b16 %v251
        %v322 = vunpack.c.l.b16 %v252
        %v323 = vunpack.c.l.b16 %v253
        %v324 = vpack.c.b16 %v321, %v320
        %v325 = vpack.c.b16 %v323, %v322
        %vm328 = vcmask 261120
        %v330 = vsel %vm328, %v249, 0
        %332 = vmatprep.subr.bf16.mxu0 0
        %333 = vmatpush1.bf16.msra.mxu0 0
        %334 = vmatprep.subr.bf16.mxu0 0
        %335 = vmatpush1.bf16.msra.mxu0 0
        %336 = vmatprep.subr.bf16.mxu0 0
        %337 = vmatpush1.bf16.msra.mxu0 0
        %338 = vmatprep.subr.bf16.mxu0 0
        %339 = vmatpush1.bf16.msra.mxu0 0
        %340 = vmatprep.subr.bf16.mxu0 0
        %341 = vmatpush1.bf16.msra.mxu0 0
        %342 = vmatprep.subr.bf16.mxu0 0
        %343 = vmatpush1.bf16.msra.mxu0 0
        %344 = vmatprep.subr.bf16.mxu0 0
        %345 = vmatpush1.bf16.msra.mxu0 %v325
        %346 = vmatprep.subr.bf16.mxu0 0
        %347 = vmatpush1.bf16.msra.mxu0 %v324
        %348 = vmatprep.subr.bf16.mxu0 0
        %349 = vmatpush2.bf16.msra.mxu0 0
        %350 = vmatprep.subr.bf16.mxu0 0
        %351 = vmatpush2.bf16.msra.mxu0 0
        %352 = vmatprep.subr.bf16.mxu0 0
        %353 = vmatpush2.bf16.msra.mxu0 0
        %354 = vmatprep.subr.bf16.mxu0 0
        %355 = vmatpush2.bf16.msra.mxu0 0
        %356 = vmatprep.subr.bf16.mxu0 0
        %357 = vmatpush2.bf16.msra.mxu0 0
        %358 = vmatprep.subr.bf16.mxu0 0
        %359 = vmatpush2.bf16.msra.mxu0 0
        %360 = vmatprep.subr.bf16.mxu0 0
        %361 = vmatpush2.bf16.msra.mxu0 0
        %362 = vmatprep.subr.bf16.mxu0 0
        %363 = vmatpush2.bf16.msra.mxu0 0
        %364 = vmatprep.mubr.bf16.mxu0 0
        %365 = vmatmul.mubr.bf16.gmra.mxu0 %v330
        %v366 = vpop.f32.mrf.mxu0
        %v367 = vadd.f32 %v289, %v366
        %v368 = vpop.f32.mrf.mxu0
        %v369 = vpop.f32.mrf.mxu0
        %v370 = vpop.f32.mrf.mxu0
        %371 = vdwg.mxu0
        %v376 = vunpack.c.l.b16 %v254
        %v377 = vunpack.c.l.b16 %v255
        %v378 = vunpack.c.l.b16 %v256
        %v379 = vunpack.c.l.b16 %v257
        %v380 = vpack.c.b16 %v377, %v376
        %v381 = vpack.c.b16 %v379, %v378
        %384 = vmatprep.subr.bf16.mxu0 0
        %385 = vmatpush1.bf16.msra.mxu0 0
        %386 = vmatprep.subr.bf16.mxu0 0
        %387 = vmatpush1.bf16.msra.mxu0 0
        %388 = vmatprep.subr.bf16.mxu0 0
        %389 = vmatpush1.bf16.msra.mxu0 0
        %390 = vmatprep.subr.bf16.mxu0 0
        %391 = vmatpush1.bf16.msra.mxu0 0
        %392 = vmatprep.subr.bf16.mxu0 0
        %393 = vmatpush1.bf16.msra.mxu0 0
        %394 = vmatprep.subr.bf16.mxu0 0
        %395 = vmatpush1.bf16.msra.mxu0 0
        %396 = vmatprep.subr.bf16.mxu0 0
        %397 = vmatpush1.bf16.msra.mxu0 %v381
        %398 = vmatprep.subr.bf16.mxu0 0
        %399 = vmatpush1.bf16.msra.mxu0 %v380
        %400 = vmatprep.subr.bf16.mxu0 0
        %401 = vmatpush2.bf16.msra.mxu0 0
        %402 = vmatprep.subr.bf16.mxu0 0
        %403 = vmatpush2.bf16.msra.mxu0 0
        %404 = vmatprep.subr.bf16.mxu0 0
        %405 = vmatpush2.bf16.msra.mxu0 0
        %406 = vmatprep.subr.bf16.mxu0 0
        %407 = vmatpush2.bf16.msra.mxu0 0
        %408 = vmatprep.subr.bf16.mxu0 0
        %409 = vmatpush2.bf16.msra.mxu0 0
        %410 = vmatprep.subr.bf16.mxu0 0
        %411 = vmatpush2.bf16.msra.mxu0 0
        %412 = vmatprep.subr.bf16.mxu0 0
        %413 = vmatpush2.bf16.msra.mxu0 0
        %414 = vmatprep.subr.bf16.mxu0 0
        %415 = vmatpush2.bf16.msra.mxu0 0
        %416 = vmatprep.mubr.bf16.mxu0 0
        %417 = vmatmul.mubr.bf16.gmra.mxu0 %v330
        %v418 = vpop.f32.mrf.mxu0
        %v419 = vadd.f32 %v293, %v418
        %v420 = vpop.f32.mrf.mxu0
        %v421 = vpop.f32.mrf.mxu0
        %v422 = vpop.f32.mrf.mxu0
        %423 = vdwg.mxu0
        %v428 = vunpack.c.l.b16 %v258
        %v429 = vunpack.c.l.b16 %v259
        %v430 = vunpack.c.l.b16 %v260
        %v431 = vunpack.c.l.b16 %v261
        %v432 = vpack.c.b16 %v429, %v428
        %v433 = vpack.c.b16 %v431, %v430
        %436 = vmatprep.subr.bf16.mxu0 0
        %437 = vmatpush1.bf16.msra.mxu0 0
        %438 = vmatprep.subr.bf16.mxu0 0
        %439 = vmatpush1.bf16.msra.mxu0 0
        %440 = vmatprep.subr.bf16.mxu0 0
        %441 = vmatpush1.bf16.msra.mxu0 0
        %442 = vmatprep.subr.bf16.mxu0 0
        %443 = vmatpush1.bf16.msra.mxu0 0
        %444 = vmatprep.subr.bf16.mxu0 0
        %445 = vmatpush1.bf16.msra.mxu0 0
        %446 = vmatprep.subr.bf16.mxu0 0
        %447 = vmatpush1.bf16.msra.mxu0 0
        %448 = vmatprep.subr.bf16.mxu0 0
        %449 = vmatpush1.bf16.msra.mxu0 %v433
        %450 = vmatprep.subr.bf16.mxu0 0
        %451 = vmatpush1.bf16.msra.mxu0 %v432
        %452 = vmatprep.subr.bf16.mxu0 0
        %453 = vmatpush2.bf16.msra.mxu0 0
        %454 = vmatprep.subr.bf16.mxu0 0
        %455 = vmatpush2.bf16.msra.mxu0 0
        %456 = vmatprep.subr.bf16.mxu0 0
        %457 = vmatpush2.bf16.msra.mxu0 0
        %458 = vmatprep.subr.bf16.mxu0 0
        %459 = vmatpush2.bf16.msra.mxu0 0
        %460 = vmatprep.subr.bf16.mxu0 0
        %461 = vmatpush2.bf16.msra.mxu0 0
        %462 = vmatprep.subr.bf16.mxu0 0
        %463 = vmatpush2.bf16.msra.mxu0 0
        %464 = vmatprep.subr.bf16.mxu0 0
        %465 = vmatpush2.bf16.msra.mxu0 0
        %466 = vmatprep.subr.bf16.mxu0 0
        %467 = vmatpush2.bf16.msra.mxu0 0
        %468 = vmatprep.mubr.bf16.mxu0 0
        %469 = vmatmul.mubr.bf16.gmra.mxu0 %v330
        %v470 = vpop.f32.mrf.mxu0
        %v471 = vadd.f32 %v297, %v470
        %v472 = vpop.f32.mrf.mxu0
        %v473 = vpop.f32.mrf.mxu0
        %v474 = vpop.f32.mrf.mxu0
        %475 = vdwg.mxu0
        %v480 = vunpack.c.l.b16 %v262
        %v481 = vunpack.c.l.b16 %v263
        %v482 = vunpack.c.l.b16 %v264
        %v483 = vunpack.c.l.b16 %v265
        %v484 = vpack.c.b16 %v481, %v480
        %v485 = vpack.c.b16 %v483, %v482
        %488 = vmatprep.subr.bf16.mxu0 0
        %489 = vmatpush1.bf16.msra.mxu0 0
        %490 = vmatprep.subr.bf16.mxu0 0
        %491 = vmatpush1.bf16.msra.mxu0 0
        %492 = vmatprep.subr.bf16.mxu0 0
        %493 = vmatpush1.bf16.msra.mxu0 0
        %494 = vmatprep.subr.bf16.mxu0 0
        %495 = vmatpush1.bf16.msra.mxu0 0
        %496 = vmatprep.subr.bf16.mxu0 0
        %497 = vmatpush1.bf16.msra.mxu0 0
        %498 = vmatprep.subr.bf16.mxu0 0
        %499 = vmatpush1.bf16.msra.mxu0 0
        %500 = vmatprep.subr.bf16.mxu0 0
        %501 = vmatpush1.bf16.msra.mxu0 %v485
        %502 = vmatprep.subr.bf16.mxu0 0
        %503 = vmatpush1.bf16.msra.mxu0 %v484
        %504 = vmatprep.subr.bf16.mxu0 0
        %505 = vmatpush2.bf16.msra.mxu0 0
        %506 = vmatprep.subr.bf16.mxu0 0
        %507 = vmatpush2.bf16.msra.mxu0 0
        %508 = vmatprep.subr.bf16.mxu0 0
        %509 = vmatpush2.bf16.msra.mxu0 0
        %510 = vmatprep.subr.bf16.mxu0 0
        %511 = vmatpush2.bf16.msra.mxu0 0
        %512 = vmatprep.subr.bf16.mxu0 0
        %513 = vmatpush2.bf16.msra.mxu0 0
        %514 = vmatprep.subr.bf16.mxu0 0
        %515 = vmatpush2.bf16.msra.mxu0 0
        %516 = vmatprep.subr.bf16.mxu0 0
        %517 = vmatpush2.bf16.msra.mxu0 0
        %518 = vmatprep.subr.bf16.mxu0 0
        %519 = vmatpush2.bf16.msra.mxu0 0
        %520 = vmatprep.mubr.bf16.mxu0 0
        %521 = vmatmul.mubr.bf16.gmra.mxu0 %v330
        %v522 = vpop.f32.mrf.mxu0
        %v523 = vadd.f32 %v301, %v522
        %v524 = vpop.f32.mrf.mxu0
        %v525 = vpop.f32.mrf.mxu0
        %v526 = vpop.f32.mrf.mxu0
        %527 = vdwg.mxu0
        %v532 = vunpack.c.l.b16 %v266
        %v533 = vunpack.c.l.b16 %v267
        %v534 = vunpack.c.l.b16 %v268
        %v535 = vunpack.c.l.b16 %v269
        %v536 = vpack.c.b16 %v533, %v532
        %v537 = vpack.c.b16 %v535, %v534
        %540 = vmatprep.subr.bf16.mxu0 0
        %541 = vmatpush1.bf16.msra.mxu0 0
        %542 = vmatprep.subr.bf16.mxu0 0
        %543 = vmatpush1.bf16.msra.mxu0 0
        %544 = vmatprep.subr.bf16.mxu0 0
        %545 = vmatpush1.bf16.msra.mxu0 0
        %546 = vmatprep.subr.bf16.mxu0 0
        %547 = vmatpush1.bf16.msra.mxu0 0
        %548 = vmatprep.subr.bf16.mxu0 0
        %549 = vmatpush1.bf16.msra.mxu0 0
        %550 = vmatprep.subr.bf16.mxu0 0
        %551 = vmatpush1.bf16.msra.mxu0 0
        %552 = vmatprep.subr.bf16.mxu0 0
        %553 = vmatpush1.bf16.msra.mxu0 %v537
        %554 = vmatprep.subr.bf16.mxu0 0
        %555 = vmatpush1.bf16.msra.mxu0 %v536
        %556 = vmatprep.subr.bf16.mxu0 0
        %557 = vmatpush2.bf16.msra.mxu0 0
        %558 = vmatprep.subr.bf16.mxu0 0
        %559 = vmatpush2.bf16.msra.mxu0 0
        %560 = vmatprep.subr.bf16.mxu0 0
        %561 = vmatpush2.bf16.msra.mxu0 0
        %562 = vmatprep.subr.bf16.mxu0 0
        %563 = vmatpush2.bf16.msra.mxu0 0
        %564 = vmatprep.subr.bf16.mxu0 0
        %565 = vmatpush2.bf16.msra.mxu0 0
        %566 = vmatprep.subr.bf16.mxu0 0
        %567 = vmatpush2.bf16.msra.mxu0 0
        %568 = vmatprep.subr.bf16.mxu0 0
        %569 = vmatpush2.bf16.msra.mxu0 0
        %570 = vmatprep.subr.bf16.mxu0 0
        %571 = vmatpush2.bf16.msra.mxu0 0
        %572 = vmatprep.mubr.bf16.mxu0 0
        %573 = vmatmul.mubr.bf16.gmra.mxu0 %v330
        %v574 = vpop.f32.mrf.mxu0
        %v575 = vadd.f32 %v305, %v574
        %v576 = vpop.f32.mrf.mxu0
        %v577 = vpop.f32.mrf.mxu0
        %v578 = vpop.f32.mrf.mxu0
        %579 = vdwg.mxu0
        %v584 = vunpack.c.l.b16 %v270
        %v585 = vunpack.c.l.b16 %v271
        %v586 = vunpack.c.l.b16 %v272
        %v587 = vunpack.c.l.b16 %v273
        %v588 = vpack.c.b16 %v585, %v584
        %v589 = vpack.c.b16 %v587, %v586
        %592 = vmatprep.subr.bf16.mxu0 0
        %593 = vmatpush1.bf16.msra.mxu0 0
        %594 = vmatprep.subr.bf16.mxu0 0
        %595 = vmatpush1.bf16.msra.mxu0 0
        %596 = vmatprep.subr.bf16.mxu0 0
        %597 = vmatpush1.bf16.msra.mxu0 0
        %598 = vmatprep.subr.bf16.mxu0 0
        %599 = vmatpush1.bf16.msra.mxu0 0
        %600 = vmatprep.subr.bf16.mxu0 0
        %601 = vmatpush1.bf16.msra.mxu0 0
        %602 = vmatprep.subr.bf16.mxu0 0
        %603 = vmatpush1.bf16.msra.mxu0 0
        %604 = vmatprep.subr.bf16.mxu0 0
        %605 = vmatpush1.bf16.msra.mxu0 %v589
        %606 = vmatprep.subr.bf16.mxu0 0
        %607 = vmatpush1.bf16.msra.mxu0 %v588
        %608 = vmatprep.subr.bf16.mxu0 0
        %609 = vmatpush2.bf16.msra.mxu0 0
        %610 = vmatprep.subr.bf16.mxu0 0
        %611 = vmatpush2.bf16.msra.mxu0 0
        %612 = vmatprep.subr.bf16.mxu0 0
        %613 = vmatpush2.bf16.msra.mxu0 0
        %614 = vmatprep.subr.bf16.mxu0 0
        %615 = vmatpush2.bf16.msra.mxu0 0
        %616 = vmatprep.subr.bf16.mxu0 0
        %617 = vmatpush2.bf16.msra.mxu0 0
        %618 = vmatprep.subr.bf16.mxu0 0
        %619 = vmatpush2.bf16.msra.mxu0 0
        %620 = vmatprep.subr.bf16.mxu0 0
        %621 = vmatpush2.bf16.msra.mxu0 0
        %622 = vmatprep.subr.bf16.mxu0 0
        %623 = vmatpush2.bf16.msra.mxu0 0
        %624 = vmatprep.mubr.bf16.mxu0 0
        %625 = vmatmul.mubr.bf16.gmra.mxu0 %v330
        %v626 = vpop.f32.mrf.mxu0
        %v627 = vadd.f32 %v309, %v626
        %v628 = vpop.f32.mrf.mxu0
        %v629 = vpop.f32.mrf.mxu0
        %v630 = vpop.f32.mrf.mxu0
        %631 = vdwg.mxu0
        %v632 = vpack.c.bf16 %v367, %v367
        %v633 = vpack.c.bf16 %v419, %v419
        %v634 = vpack.c.bf16 %v471, %v471
        %v635 = vpack.c.bf16 %v523, %v523
        %v636 = vpack.c.bf16 %v575, %v575
        %v637 = vpack.c.bf16 %v627, %v627
        %v638 = vld [vmem:[%s1] sm:$0xff]
        %vm639 = vcmask 130048
        %v641 = vsel %vm639, %v632, 0
        %v644 = vsel %vm639, %v634, 0
        %646 = vmatprep.subr.bf16.mxu0 0
        %647 = vmatpush1.bf16.xpose.msra.mxu0 0
        %648 = vmatprep.subr.bf16.mxu0 0
        %649 = vmatpush1.bf16.xpose.msra.mxu0 0
        %650 = vmatprep.subr.bf16.mxu0 0
        %651 = vmatpush1.bf16.xpose.msra.mxu0 0
        %652 = vmatprep.subr.bf16.mxu0 0
        %653 = vmatpush1.bf16.xpose.msra.mxu0 0
        %654 = vmatprep.subr.bf16.mxu0 0
        %655 = vmatpush1.bf16.xpose.msra.mxu0 0
        %656 = vmatprep.subr.bf16.mxu0 0
        %657 = vmatpush1.bf16.xpose.msra.mxu0 0
        %658 = vmatprep.subr.bf16.mxu0 0
        %659 = vmatpush1.bf16.xpose.msra.mxu0 0
        %660 = vmatprep.subr.bf16.mxu0 0
        %661 = vmatpush1.bf16.xpose.msra.mxu0 %v644
        %662 = vmatprep.subr.bf16.mxu0 0
        %663 = vmatpush2.bf16.xpose.msra.mxu0 0
        %664 = vmatprep.subr.bf16.mxu0 0
        %665 = vmatpush2.bf16.xpose.msra.mxu0 0
        %666 = vmatprep.subr.bf16.mxu0 0
        %667 = vmatpush2.bf16.xpose.msra.mxu0 0
        %668 = vmatprep.subr.bf16.mxu0 0
        %669 = vmatpush2.bf16.xpose.msra.mxu0 0
        %670 = vmatprep.subr.bf16.mxu0 0
        %671 = vmatpush2.bf16.xpose.msra.mxu0 0
        %672 = vmatprep.subr.bf16.mxu0 0
        %673 = vmatpush2.bf16.xpose.msra.mxu0 0
        %674 = vmatprep.subr.bf16.mxu0 0
        %675 = vmatpush2.bf16.xpose.msra.mxu0 0
        %676 = vmatprep.subr.bf16.mxu0 0
        %677 = vmatpush2.bf16.xpose.msra.mxu0 0
        %678 = vmatprep.mubr.bf16.mxu0 0
        %679 = vmatmul.mubr.bf16.gmra.mxu0 %v641
        %v680 = vpop.f32.mrf.mxu0
        %v681 = vadd.f32 %v638, %v680
        %v682 = vpop.f32.mrf.mxu0
        %v683 = vpop.f32.mrf.mxu0
        %v684 = vpop.f32.mrf.mxu0
        %685 = vdwg.mxu0
        %v687 = vsel %vm639, %v633, 0
        %v690 = vsel %vm639, %v635, 0
        %692 = vmatprep.subr.bf16.mxu0 0
        %693 = vmatpush1.bf16.xpose.msra.mxu0 0
        %694 = vmatprep.subr.bf16.mxu0 0
        %695 = vmatpush1.bf16.xpose.msra.mxu0 0
        %696 = vmatprep.subr.bf16.mxu0 0
        %697 = vmatpush1.bf16.xpose.msra.mxu0 0
        %698 = vmatprep.subr.bf16.mxu0 0
        %699 = vmatpush1.bf16.xpose.msra.mxu0 0
        %700 = vmatprep.subr.bf16.mxu0 0
        %701 = vmatpush1.bf16.xpose.msra.mxu0 0
        %702 = vmatprep.subr.bf16.mxu0 0
        %703 = vmatpush1.bf16.xpose.msra.mxu0 0
        %704 = vmatprep.subr.bf16.mxu0 0
        %705 = vmatpush1.bf16.xpose.msra.mxu0 0
        %706 = vmatprep.subr.bf16.mxu0 0
        %707 = vmatpush1.bf16.xpose.msra.mxu0 %v690
        %708 = vmatprep.subr.bf16.mxu0 0
        %709 = vmatpush2.bf16.xpose.msra.mxu0 0
        %710 = vmatprep.subr.bf16.mxu0 0
        %711 = vmatpush2.bf16.xpose.msra.mxu0 0
        %712 = vmatprep.subr.bf16.mxu0 0
        %713 = vmatpush2.bf16.xpose.msra.mxu0 0
        %714 = vmatprep.subr.bf16.mxu0 0
        %715 = vmatpush2.bf16.xpose.msra.mxu0 0
        %716 = vmatprep.subr.bf16.mxu0 0
        %717 = vmatpush2.bf16.xpose.msra.mxu0 0
        %718 = vmatprep.subr.bf16.mxu0 0
        %719 = vmatpush2.bf16.xpose.msra.mxu0 0
        %720 = vmatprep.subr.bf16.mxu0 0
        %721 = vmatpush2.bf16.xpose.msra.mxu0 0
        %722 = vmatprep.subr.bf16.mxu0 0
        %723 = vmatpush2.bf16.xpose.msra.mxu0 0
        %724 = vmatprep.mubr.bf16.mxu0 0
        %725 = vmatmul.mubr.bf16.gmra.mxu0 %v687
        %v726 = vpop.f32.mrf.mxu0
        %v727 = vadd.f32 %v638, %v726
        %v728 = vpop.f32.mrf.mxu0
        %v729 = vpop.f32.mrf.mxu0
        %v730 = vpop.f32.mrf.mxu0
        %731 = vdwg.mxu0
        %vm732 = vcmask 64512
        %v733 = vsel %vm732, %v681, -inf
        %734 = vmax.xlane.f32.xlu0 %v733
        %v735 = vpop.xlane.xlu0 %734
        %v736 = vsel %vm732, %v727, -inf
        %737 = vmax.xlane.f32.xlu0 %v736
        %v738 = vpop.xlane.xlu0 %737
        %v739 = vsub.f32 %v681, %v735
        %v740 = vsub.f32 %v727, %v738
        %v741 = vmul.f32 %v739, 1.442695
        %v742 = vpow.pop %v741
        %v743 = vmul.f32 %v740, 1.442695
        %v744 = vpow.pop %v743
        %v745 = vsel %vm732, %v742, 0.0
        %746 = vadd.xlane.f32.xlu0 %v745
        %v747 = vpop.xlane.xlu0 %746
        %v748 = vsel %vm732, %v744, 0.0
        %749 = vadd.xlane.f32.xlu0 %v748
        %v750 = vpop.xlane.xlu0 %749
        %v751 = vrcp.pop %v747
        %v752 = vrcp.pop %v750
        %v753 = vmul.f32 %v742, %v751
        %v754 = vmul.f32 %v744, %v752
        %v755 = vpack.c.bf16 %v753, %v753
        %v756 = vpack.c.bf16 %v754, %v754
        %v758 = vsel %vm732, %v755, 0
        %vm760 = vcmask 1043456
        %v762 = vsel %vm760, %v636, 0
        %764 = vmatprep.subr.bf16.mxu0 0
        %765 = vmatpush1.bf16.msra.mxu0 0
        %766 = vmatprep.subr.bf16.mxu0 0
        %767 = vmatpush1.bf16.msra.mxu0 0
        %768 = vmatprep.subr.bf16.mxu0 0
        %769 = vmatpush1.bf16.msra.mxu0 0
        %770 = vmatprep.subr.bf16.mxu0 0
        %771 = vmatpush1.bf16.msra.mxu0 0
        %772 = vmatprep.subr.bf16.mxu0 0
        %773 = vmatpush1.bf16.msra.mxu0 0
        %774 = vmatprep.subr.bf16.mxu0 0
        %775 = vmatpush1.bf16.msra.mxu0 0
        %776 = vmatprep.subr.bf16.mxu0 0
        %777 = vmatpush1.bf16.msra.mxu0 0
        %778 = vmatprep.subr.bf16.mxu0 0
        %779 = vmatpush1.bf16.msra.mxu0 %v762
        %780 = vmatprep.subr.bf16.mxu0 0
        %781 = vmatpush2.bf16.msra.mxu0 0
        %782 = vmatprep.subr.bf16.mxu0 0
        %783 = vmatpush2.bf16.msra.mxu0 0
        %784 = vmatprep.subr.bf16.mxu0 0
        %785 = vmatpush2.bf16.msra.mxu0 0
        %786 = vmatprep.subr.bf16.mxu0 0
        %787 = vmatpush2.bf16.msra.mxu0 0
        %788 = vmatprep.subr.bf16.mxu0 0
        %789 = vmatpush2.bf16.msra.mxu0 0
        %790 = vmatprep.subr.bf16.mxu0 0
        %791 = vmatpush2.bf16.msra.mxu0 0
        %792 = vmatprep.subr.bf16.mxu0 0
        %793 = vmatpush2.bf16.msra.mxu0 0
        %794 = vmatprep.subr.bf16.mxu0 0
        %795 = vmatpush2.bf16.msra.mxu0 0
        %796 = vmatprep.mubr.bf16.mxu0 0
        %797 = vmatmul.mubr.bf16.gmra.mxu0 %v758
        %v798 = vpop.f32.mrf.mxu0
        %v799 = vadd.f32 0.0, %v798
        %v800 = vpop.f32.mrf.mxu0
        %v801 = vpop.f32.mrf.mxu0
        %v802 = vpop.f32.mrf.mxu0
        %803 = vdwg.mxu0
        %v805 = vsel %vm732, %v756, 0
        %v808 = vsel %vm760, %v637, 0
        %810 = vmatprep.subr.bf16.mxu0 0
        %811 = vmatpush1.bf16.msra.mxu0 0
        %812 = vmatprep.subr.bf16.mxu0 0
        %813 = vmatpush1.bf16.msra.mxu0 0
        %814 = vmatprep.subr.bf16.mxu0 0
        %815 = vmatpush1.bf16.msra.mxu0 0
        %816 = vmatprep.subr.bf16.mxu0 0
        %817 = vmatpush1.bf16.msra.mxu0 0
        %818 = vmatprep.subr.bf16.mxu0 0
        %819 = vmatpush1.bf16.msra.mxu0 0
        %820 = vmatprep.subr.bf16.mxu0 0
        %821 = vmatpush1.bf16.msra.mxu0 0
        %822 = vmatprep.subr.bf16.mxu0 0
        %823 = vmatpush1.bf16.msra.mxu0 0
        %824 = vmatprep.subr.bf16.mxu0 0
        %825 = vmatpush1.bf16.msra.mxu0 %v808
        %826 = vmatprep.subr.bf16.mxu0 0
        %827 = vmatpush2.bf16.msra.mxu0 0
        %828 = vmatprep.subr.bf16.mxu0 0
        %829 = vmatpush2.bf16.msra.mxu0 0
        %830 = vmatprep.subr.bf16.mxu0 0
        %831 = vmatpush2.bf16.msra.mxu0 0
        %832 = vmatprep.subr.bf16.mxu0 0
        %833 = vmatpush2.bf16.msra.mxu0 0
        %834 = vmatprep.subr.bf16.mxu0 0
        %835 = vmatpush2.bf16.msra.mxu0 0
        %836 = vmatprep.subr.bf16.mxu0 0
        %837 = vmatpush2.bf16.msra.mxu0 0
        %838 = vmatprep.subr.bf16.mxu0 0
        %839 = vmatpush2.bf16.msra.mxu0 0
        %840 = vmatprep.subr.bf16.mxu0 0
        %841 = vmatpush2.bf16.msra.mxu0 0
        %842 = vmatprep.mubr.bf16.mxu0 0
        %843 = vmatmul.mubr.bf16.gmra.mxu0 %v805
        %v844 = vpop.f32.mrf.mxu0
        %v845 = vadd.f32 0.0, %v844
        %v846 = vpop.f32.mrf.mxu0
        %v847 = vpop.f32.mrf.mxu0
        %v848 = vpop.f32.mrf.mxu0
        %849 = vdwg.mxu0
        %v850 = vpack.c.bf16 %v799, %v799
        %v851 = vpack.c.bf16 %v845, %v845
        %v852 = vld [vmem:[%s4] sm:$0xf]
        %v853 = vld [vmem:[%s4 + $0x4] sm:$0xf]
        %v854 = vld [vmem:[%s4 + $0x8] sm:$0xf]
        %v855 = vld [vmem:[%s4 + $0xc] sm:$0xf]
        %v858 = vunpack.c.l.b16 %v852
        %v859 = vunpack.c.l.b16 %v853
        %v860 = vpack.c.b16 %v859, %v858
        %v863 = vsel %vm639, %v850, 0
        %865 = vmatprep.subr.bf16.mxu0 0
        %866 = vmatpush1.bf16.msra.mxu0 0
        %867 = vmatprep.subr.bf16.mxu0 0
        %868 = vmatpush1.bf16.msra.mxu0 0
        %869 = vmatprep.subr.bf16.mxu0 0
        %870 = vmatpush1.bf16.msra.mxu0 0
        %871 = vmatprep.subr.bf16.mxu0 0
        %872 = vmatpush1.bf16.msra.mxu0 0
        %873 = vmatprep.subr.bf16.mxu0 0
        %874 = vmatpush1.bf16.msra.mxu0 0
        %875 = vmatprep.subr.bf16.mxu0 0
        %876 = vmatpush1.bf16.msra.mxu0 0
        %877 = vmatprep.subr.bf16.mxu0 0
        %878 = vmatpush1.bf16.msra.mxu0 0
        %879 = vmatprep.subr.bf16.mxu0 0
        %880 = vmatpush1.bf16.msra.mxu0 %v860
        %881 = vmatprep.subr.bf16.mxu0 0
        %882 = vmatpush2.bf16.msra.mxu0 0
        %883 = vmatprep.subr.bf16.mxu0 0
        %884 = vmatpush2.bf16.msra.mxu0 0
        %885 = vmatprep.subr.bf16.mxu0 0
        %886 = vmatpush2.bf16.msra.mxu0 0
        %887 = vmatprep.subr.bf16.mxu0 0
        %888 = vmatpush2.bf16.msra.mxu0 0
        %889 = vmatprep.subr.bf16.mxu0 0
        %890 = vmatpush2.bf16.msra.mxu0 0
        %891 = vmatprep.subr.bf16.mxu0 0
        %892 = vmatpush2.bf16.msra.mxu0 0
        %893 = vmatprep.subr.bf16.mxu0 0
        %894 = vmatpush2.bf16.msra.mxu0 0
        %895 = vmatprep.subr.bf16.mxu0 0
        %896 = vmatpush2.bf16.msra.mxu0 0
        %897 = vmatprep.mubr.bf16.mxu0 0
        %898 = vmatmul.mubr.bf16.gmra.mxu0 %v863
        %v899 = vpop.f32.mrf.mxu0
        %v900 = vadd.f32 0.0, %v899
        %v901 = vpop.f32.mrf.mxu0
        %v902 = vpop.f32.mrf.mxu0
        %v903 = vpop.f32.mrf.mxu0
        %904 = vdwg.mxu0
        %v907 = vunpack.c.l.b16 %v854
        %v908 = vunpack.c.l.b16 %v855
        %v909 = vpack.c.b16 %v908, %v907
        %v912 = vsel %vm639, %v851, 0
        %914 = vmatprep.subr.bf16.mxu0 0
        %915 = vmatpush1.bf16.msra.mxu0 0
        %916 = vmatprep.subr.bf16.mxu0 0
        %917 = vmatpush1.bf16.msra.mxu0 0
        %918 = vmatprep.subr.bf16.mxu0 0
        %919 = vmatpush1.bf16.msra.mxu0 0
        %920 = vmatprep.subr.bf16.mxu0 0
        %921 = vmatpush1.bf16.msra.mxu0 0
        %922 = vmatprep.subr.bf16.mxu0 0
        %923 = vmatpush1.bf16.msra.mxu0 0
        %924 = vmatprep.subr.bf16.mxu0 0
        %925 = vmatpush1.bf16.msra.mxu0 0
        %926 = vmatprep.subr.bf16.mxu0 0
        %927 = vmatpush1.bf16.msra.mxu0 0
        %928 = vmatprep.subr.bf16.mxu0 0
        %929 = vmatpush1.bf16.msra.mxu0 %v909
        %930 = vmatprep.subr.bf16.mxu0 0
        %931 = vmatpush2.bf16.msra.mxu0 0
        %932 = vmatprep.subr.bf16.mxu0 0
        %933 = vmatpush2.bf16.msra.mxu0 0
        %934 = vmatprep.subr.bf16.mxu0 0
        %935 = vmatpush2.bf16.msra.mxu0 0
        %936 = vmatprep.subr.bf16.mxu0 0
        %937 = vmatpush2.bf16.msra.mxu0 0
        %938 = vmatprep.subr.bf16.mxu0 0
        %939 = vmatpush2.bf16.msra.mxu0 0
        %940 = vmatprep.subr.bf16.mxu0 0
        %941 = vmatpush2.bf16.msra.mxu0 0
        %942 = vmatprep.subr.bf16.mxu0 0
        %943 = vmatpush2.bf16.msra.mxu0 0
        %944 = vmatprep.subr.bf16.mxu0 0
        %945 = vmatpush2.bf16.msra.mxu0 0
        %946 = vmatprep.mubr.bf16.mxu0 0
        %947 = vmatmul.mubr.bf16.gmra.mxu0 %v912
        %v948 = vpop.f32.mrf.mxu0
        %v949 = vadd.f32 0.0, %v948
        %v950 = vpop.f32.mrf.mxu0
        %v951 = vpop.f32.mrf.mxu0
        %v952 = vpop.f32.mrf.mxu0
        %953 = vdwg.mxu0
        %v954 = vadd.f32 %v900, %v949
        %v955 = vld [vmem:[%s5] sm:$0x1]
        %v957 = vlaneseq
        %v958 = vshrl.u32 %v957, 7
        %v959 = vsub.s32 0, %v958
        %v960 = vrot.slane %v955, %v959
        %v962 = vadd.f32 %v954, %v960
        %963 = vst.msk [vmem:[%s242] sm:$0xff] %vm328, %v962
        %s964 = sand.u32 %s159, 1
        %s965 = scalar_lea.sflag [#allocation3], %s964
        %s966 = sand.u32 %s159, 1
        %s967 = smul.addr %s966, 8
        %s968 = scalar_lea.vmem [#allocation2], %s967
        // Predicated region
        $region45: #{tpu_custom_call.1} parent=43 // pred_check
          %p969 = pneg %p169
        $region46: #{tpu_custom_call.1} parent=43 // pred_check_branch
          %971 = sbr.rel (%p969) target = $region48
        $region47: #{tpu_custom_call.1} parent=43 // pred_region
          %s973 = ssub.s32 128, 128
          %974 = vsyncadd %s965, %s973
          %s975 = smul.addr %s20, 128
          %s976 = scalar_lea.hbm %s6, %s975
          %s978 = sshll.u32 %s968, 4
          %s979 = int_to_ptr.vmem [resolvable:$true] %s978
          %981 = dma.vmem_to_hbm [thread:$0]  %s979, 128, %s976, %s965
        $region48: #{tpu_custom_call.1} parent=43 // pred_fallthru
          _
      $region44: #{tpu_custom_call.1} parent=5 // pred_fallthru
        _
      %p982 = scmp.le.s32.totalorder 2, %s15
      // Predicated region
      $region49: #{tpu_custom_call.1} parent=5 // pred_check
        %p983 = pneg %p982
      $region50: #{tpu_custom_call.1} parent=5 // pred_check_branch
        %985 = sbr.rel (%p983) target = $region52
      $region51: #{tpu_custom_call.1} parent=5 // pred_region
        %s986 = ssub.s32 %s15, 2
        // Predicated region
        $region53: #{tpu_custom_call.1} parent=51 // pred_check
          %p987 = pneg %p175
        $region54: #{tpu_custom_call.1} parent=51 // pred_check_branch
          %989 = sbr.rel (%p987) target = $region56
        $region55: #{tpu_custom_call.1} parent=51 // pred_region
          %s990 = sand.u32 %s160, 1
          %s991 = scalar_lea.sflag [#allocation3], %s990
          %s992 = sand.u32 %s160, 1
          %s993 = smul.addr %s992, 8
          %s994 = scalar_lea.vmem [#allocation2], %s993
          %995 = dma.done %s991, 128
        $region56: #{tpu_custom_call.1} parent=51 // pred_fallthru
          _
      $region52: #{tpu_custom_call.1} parent=5 // pred_fallthru
        _
    $region6: #{tpu_custom_call.1} parent=1 // loop_footer
      %s19 = sadd.s32 1, %s15
    $region7: #{tpu_custom_call.1} parent=1 // loop_footer_branch
      %14 = sbr.rel target = $region3
    $region8: #{tpu_custom_call.1} parent=1 // loop_exit
      _
    %996 = vsyncpa [#allocation3], 1
    %s997 = scalar_lea.sflag [#allocation3], 1
    %998 = vsyncpa %s997, 1

</llo_original>
